<compile_context>
chip_gen: v7x
topology: tpu7x:2x2x1
jax: 0.10.0
libtpu: 0.0.40
codegen_flags: <defaults>
</compile_context>

<pallas_src>
import functools
import math

import jax
import jax.numpy as jnp
from jax.experimental import pallas as pl
from jax.experimental.pallas import tpu as pltpu


def _norm_kernel(x_ref, p_ref, o_ref, *, eps: float, d_valid: int):
    # x_ref: (row_tile, Dp) tile of the flattened, lane-padded (rows, Dp) input.
    # p_ref: (2, Dp) f32 fused parameters: row 0 = alpha, row 1 = bias
    #        (both zero-padded past d_valid).
    x = x_ref[...].astype(jnp.float32)
    d_padded = x.shape[-1]

    p = p_ref[...]                      # constant block index -> resident, no re-DMA
    alpha = p[0:1, :]                   # (1, Dp)
    bias = p[1:2, :]                    # (1, Dp)

    if d_valid != d_padded:
        # Lane mask so the padded tail never contributes to the row statistics.
        lane = jax.lax.broadcasted_iota(jnp.int32, x.shape, dimension=1)
        mask = lane < d_valid
        xm = jnp.where(mask, x, jnp.float32(0.0))
    else:
        mask = None
        xm = x

    # Two-pass mean / centered sum-of-squares to match torch.std numerics.
    mean = jnp.sum(xm, axis=-1, keepdims=True) * jnp.float32(1.0 / d_valid)
    xc = x - mean
    xcm = jnp.where(mask, xc, jnp.float32(0.0)) if mask is not None else xc
    # torch.std uses the unbiased estimator (divide by N-1).
    var = jnp.sum(xcm * xcm, axis=-1, keepdims=True) * jnp.float32(1.0 / (d_valid - 1))
    std = jnp.sqrt(var)

    # One reciprocal per ROW + broadcast multiply instead of a full-tile divide.
    # Exact (approx=False): kernel is HBM-bound, approx buys nothing measurable.
    inv = pl.reciprocal(std + jnp.float32(eps), approx=False)

    # Padded lanes: alpha = bias = 0 -> out = 0 there; wrapper slices them off.
    out = xc * inv * alpha + bias
    o_ref[...] = out.astype(o_ref.dtype)


def _default_vmem_limit_bytes() -> int:
    """Device-aware scoped-VMEM limit: 48 MiB on v7x (64 MiB physical),
    64 MiB on v5e/v6e (128 MiB physical)."""
    try:
        cap = pltpu.get_tpu_info().vmem_capacity_bytes
    except Exception:
        cap = 64 * 1024 * 1024
    return int(min(64 * 1024 * 1024, (cap * 3) // 4))


def _choose_row_tile(rows: int, d_padded: int, itemsize: int,
                     vmem_limit_bytes: int) -> int:
    """Largest sublane-aligned row tile sized on the f32 intermediate footprint,
    clamped so the full per-step VMEM footprint fits, and capped so the grid
    keeps >= 4 steps (>= 2 per TensorCore on v7x megacore)."""
    sub = {4: 8, 2: 16, 1: 32}.get(itemsize, 8)      # sublane packing per dtype
    row_f32 = d_padded * 4                           # f32 bytes per row (intermediates)
    row_io = d_padded * itemsize                     # stored-dtype bytes per row

    # Target ~6-8 MiB of f32 tile data per step, derived from the VMEM limit.
    target_f32 = min(8 << 20, vmem_limit_bytes // 8)
    rt = target_f32 // row_f32

    # Full per-step footprint: double-buffered in + out in the stored dtype,
    # plus ~3x f32 live intermediates (x32, xc, out) in compiler-managed VMEM.
    per_row = 4 * row_io + 3 * row_f32
    rt = min(rt, (vmem_limit_bytes * 3 // 4) // max(1, per_row))

    rt = max(sub, (rt // sub) * sub)

    # Keep >= 4 total grid steps when possible so each of v7x's two TensorCores
    # still gets >= 2 steps of DMA/compute pipelining.
    quarter = -(-rows // 4)                          # ceil(rows / 4)
    quarter = -(-quarter // sub) * sub               # round up to sublane multiple
    rt = min(rt, max(sub, quarter))
    return int(rt)


def norm_pallas(x, alpha, bias, *, eps=1e-6, row_tile=None, vmem_limit_bytes=None):
    """x: (..., D) float array (e.g. (B, S, D)); alpha/bias: (D,)."""
    orig_shape = x.shape
    D = orig_shape[-1]
    if D < 2:
        # torch.std over a single element is NaN (divide by N-1 = 0); guard it.
        raise ValueError("Norm requires emb_dim >= 2 (unbiased std).")
    rows = math.prod(orig_shape[:-1])

    # Lane-dense padding of the feature dim (unmasked full-width stores).
    Dp = -(-D // 128) * 128

    x2 = x.reshape(rows, D)
    if Dp != D:
        x2 = jnp.pad(x2, ((0, 0), (0, Dp - D)))

    # Fused, pre-cast parameter slab: row 0 = alpha, row 1 = bias (zero-padded).
    params = jnp.stack([alpha.reshape(D).astype(jnp.float32),
                        bias.reshape(D).astype(jnp.float32)], axis=0)
    if Dp != D:
        params = jnp.pad(params, ((0, 0), (0, Dp - D)))

    if vmem_limit_bytes is None:
        vmem_limit_bytes = _default_vmem_limit_bytes()
    if row_tile is None:
        row_tile = _choose_row_tile(rows, Dp, jnp.dtype(x.dtype).itemsize,
                                    vmem_limit_bytes)

    grid = (pl.cdiv(rows, row_tile),)   # partial last block handled by Pallas

    kernel = functools.partial(_norm_kernel, eps=eps, d_valid=D)

    out2 = pl.pallas_call(
        kernel,
        out_shape=jax.ShapeDtypeStruct((rows, Dp), x.dtype),
        grid_spec=pltpu.PrefetchScalarGridSpec(
            num_scalar_prefetch=0,
            grid=grid,
            in_specs=[
                pl.BlockSpec((row_tile, Dp), lambda i: (i, 0)),   # x rows
                pl.BlockSpec((2, Dp), lambda i: (0, 0)),          # alpha+bias (resident)
            ],
            out_specs=pl.BlockSpec((row_tile, Dp), lambda i: (i, 0)),
        ),
        compiler_params=pltpu.CompilerParams(
            dimension_semantics=("parallel",),
            vmem_limit_bytes=int(vmem_limit_bytes),
        ),
    )(x2, params)

    if Dp != D:
        out2 = out2[:, :D]
    return out2.reshape(orig_shape)


def norm_ref(x, alpha, bias, eps=1e-6):
    """Pure-JAX reference mirroring the PyTorch forward."""
    x32 = x.astype(jnp.float32)
    mean = jnp.mean(x32, axis=-1, keepdims=True)
    xc = x32 - mean
    var = jnp.sum(xc * xc, axis=-1, keepdims=True) / (x.shape[-1] - 1)
    std = jnp.sqrt(var)
    return (alpha.astype(jnp.float32) * (xc / (std + eps))
            + bias.astype(jnp.float32)).astype(x.dtype)


if __name__ == "__main__":
    key = jax.random.PRNGKey(0)

    # 1) Lane-dense shape (D % 128 == 0), default Norm init (alpha=1, bias=0).
    B, S, D = 2, 8, 128
    x = jax.random.normal(key, (B, S, D), dtype=jnp.float32)
    alpha = jnp.ones((D,), dtype=jnp.float32)
    bias = jnp.zeros((D,), dtype=jnp.float32)

    out = jax.block_until_ready(norm_pallas(x, alpha, bias, eps=1e-6))
    ref = norm_ref(x, alpha, bias, eps=1e-6)
    assert out.shape == (B, S, D)
    assert jnp.allclose(out, ref, atol=1e-5, rtol=1e-5), "mismatch vs reference"

    # 2) Lane-sparse D (padded to 128 internally) + ragged rows (partial last
    #    block via pl.cdiv grid), with non-trivial alpha/bias.
    B2, S2, D2 = 3, 5, 96
    x2 = jax.random.normal(jax.random.PRNGKey(1), (B2, S2, D2), dtype=jnp.float32)
    a2 = jax.random.normal(jax.random.PRNGKey(2), (D2,), dtype=jnp.float32)
    b2 = jax.random.normal(jax.random.PRNGKey(3), (D2,), dtype=jnp.float32)
    out2 = jax.block_until_ready(norm_pallas(x2, a2, b2, eps=1e-6))
    ref2 = norm_ref(x2, a2, b2, eps=1e-6)
    assert out2.shape == (B2, S2, D2)
    assert jnp.allclose(out2, ref2, atol=1e-5, rtol=1e-5), "mismatch (padded D)"

    # 3) bf16 input: exercises f32-footprint tile sizing and the dtype round-trip.
    x3 = jax.random.normal(jax.random.PRNGKey(4), (B, S, D), dtype=jnp.bfloat16)
    out3 = jax.block_until_ready(norm_pallas(x3, alpha, bias, eps=1e-6))
    ref3 = norm_ref(x3, alpha, bias, eps=1e-6)
    assert out3.shape == (B, S, D)
    assert jnp.allclose(out3.astype(jnp.float32), ref3.astype(jnp.float32),
                        atol=2e-2, rtol=2e-2), "mismatch (bf16)"

    print("KERNEL_OK")
</pallas_src>

<mosaic_0001>
module attributes {stable_mosaic.version = 11 : i64} {
  func.func @_norm_kernel(%arg0: i32, %arg1: memref<8x128xf32, #tpu.memory_space<vmem>>, %arg2: memref<2x128xf32, #tpu.memory_space<vmem>>, %arg3: memref<8x128xf32, #tpu.memory_space<vmem>>) attributes {dimension_semantics = [#tpu.dimension_semantics<parallel>], iteration_bounds = array<i64: 2>, scalar_prefetch = 0 : i64, scratch_operands = 0 : i64, tpu.core_type = #tpu.core_type<tc>, window_params = [{transform_indices = @transform_0, window_bounds = array<i64: 8, 128>}, {pipeline_mode = #tpu.pipeline_mode<synchronous>, transform_indices = @transform_1, window_bounds = array<i64: 2, 128>}, {transform_indices = @transform_2, window_bounds = array<i64: 8, 128>}]} {
    %c0 = arith.constant 0 : index
    %c0_0 = arith.constant 0 : index
    %0 = vector.load %arg1[%c0, %c0_0] : memref<8x128xf32, #tpu.memory_space<vmem>>, vector<8x128xf32>
    %c0_1 = arith.constant 0 : index
    %c0_2 = arith.constant 0 : index
    %1 = vector.load %arg2[%c0_1, %c0_2] : memref<2x128xf32, #tpu.memory_space<vmem>>, vector<2x128xf32>
    %2 = vector.extract_strided_slice %1 {offsets = [0, 0], sizes = [1, 128], strides = [1, 1]} : vector<2x128xf32> to vector<1x128xf32>
    %3 = vector.extract_strided_slice %1 {offsets = [1, 0], sizes = [1, 128], strides = [1, 1]} : vector<2x128xf32> to vector<1x128xf32>
    %cst = arith.constant dense<0.000000e+00> : vector<8xf32>
    %4 = vector.multi_reduction <add>, %0, %cst [1] : vector<8x128xf32> to vector<8xf32>
    %5 = vector.shape_cast %4 : vector<8xf32> to vector<8x1xf32>
    %cst_3 = arith.constant 7.812500e-03 : f32
    %6 = vector.broadcast %cst_3 : f32 to vector<8x1xf32>
    %7 = arith.mulf %5, %6 : vector<8x1xf32>
    %8 = vector.broadcast %7 : vector<8x1xf32> to vector<8x128xf32>
    %9 = arith.subf %0, %8 : vector<8x128xf32>
    %10 = arith.mulf %9, %9 : vector<8x128xf32>
    %cst_4 = arith.constant dense<0.000000e+00> : vector<8xf32>
    %11 = vector.multi_reduction <add>, %10, %cst_4 [1] : vector<8x128xf32> to vector<8xf32>
    %12 = vector.shape_cast %11 : vector<8xf32> to vector<8x1xf32>
    %cst_5 = arith.constant 0.00787401571 : f32
    %13 = vector.broadcast %cst_5 : f32 to vector<8x1xf32>
    %14 = arith.mulf %12, %13 : vector<8x1xf32>
    %15 = math.sqrt %14 : vector<8x1xf32>
    %cst_6 = arith.constant 9.99999997E-7 : f32
    %16 = vector.broadcast %cst_6 : f32 to vector<8x1xf32>
    %17 = arith.addf %15, %16 : vector<8x1xf32>
    %18 = tpu.reciprocal %17 : vector<8x1xf32> -> vector<8x1xf32>
    %19 = vector.broadcast %18 : vector<8x1xf32> to vector<8x128xf32>
    %20 = arith.mulf %9, %19 : vector<8x128xf32>
    %21 = vector.broadcast %2 : vector<1x128xf32> to vector<8x128xf32>
    %22 = arith.mulf %20, %21 : vector<8x128xf32>
    %23 = vector.broadcast %3 : vector<1x128xf32> to vector<8x128xf32>
    %24 = arith.addf %22, %23 : vector<8x128xf32>
    %c0_7 = arith.constant 0 : index
    %c0_8 = arith.constant 0 : index
    %25 = vector.load %arg3[%c0_7, %c0_8] : memref<8x128xf32, #tpu.memory_space<vmem>>, vector<8x128xf32>
    tpu.vector_store %arg3[%c0_7, %c0_8], %24 {strides = array<i32>} : memref<8x128xf32, #tpu.memory_space<vmem>>, vector<8x128xf32>,
    return
  }
  func.func @transform_0(%arg0: i32) -> (i32, i32) {
    %c0_i32 = arith.constant 0 : i32
    %c0_i32_0 = arith.constant 0 : i32
    return %arg0, %c0_i32 : i32, i32
  }
  func.func @transform_1(%arg0: i32) -> (i32, i32) {
    %c0_i32 = arith.constant 0 : i32
    %c0_i32_0 = arith.constant 0 : i32
    %c0_i32_1 = arith.constant 0 : i32
    return %c0_i32, %c0_i32_0 : i32, i32
  }
  func.func @transform_2(%arg0: i32) -> (i32, i32) {
    %c0_i32 = arith.constant 0 : i32
    %c0_i32_0 = arith.constant 0 : i32
    return %arg0, %c0_i32 : i32, i32
  }
}

</mosaic_0001>

<llo_original>
// kernel: tpu_custom_call.1
$region0: #{tpu_custom_call.1}
  #allocation0 [shape = 'u32[]', space=smem, size = 0x4, offset = 0x4, fixed_abs, tag = 'smem constant byte address 0x4 - core index']
  #allocation1 [shape = 'u32[144,128]{1,0:T(1,128)}', space=vmem, size = 0x12000, scoped, tag = 'internal scratch']
  %s0 = inlined_call_operand.hbm [shape: f32[16,128], index: 0, kind: input, shape index: {}]
  %s1 = inlined_call_operand.vmem [shape: f32[2,128], index: 1, kind: input, shape index: {}]
  %s2 = inlined_call_operand.hbm [shape: f32[16,128], index: 2, kind: output, shape index: {}]
  %s3 = sld [smem:[#allocation0]]
  $region45: #{tpu_custom_call.1} parent=0
    _
  %s5 = ssub.s32 1, %s3
  %s6 = scalar_select 0, %s5, %s3
  $region1: #{tpu_custom_call.1} parent=0
    #allocation2 [shape = 'u8[8192]{0}', space=vmem, size = 0x2000, scoped, tag = 'input window, operand 0']
    #allocation3 [shape = 's32[2]{0}', space=sflag, size = 0x8, scoped, tag = 'scoped memory for tpu_custom_call.1']
    #allocation4 [shape = 's32[2]{0}', space=sflag, size = 0x8, scoped, tag = 'scoped memory for tpu_custom_call.1']
    #allocation5 [shape = 'u8[8192]{0}', space=vmem, size = 0x2000, scoped, tag = 'output window, operand 0']
    %7 = vsyncpa [#allocation3], 0
    %s8 = scalar_lea.sflag [#allocation3], 1
    %9 = vsyncpa %s8, 0
    %10 = vsyncpa [#allocation4], 0
    %s11 = scalar_lea.sflag [#allocation4], 1
    %12 = vsyncpa %s11, 0
    loop: start=0, step=1, limit=4
    $region2: #{tpu_custom_call.1} parent=1 // loop_pre_header
      _
    $region3: #{tpu_custom_call.1} parent=1 // loop_header
      %s14 = sphi 0, %s18
      %p15 = scmp.ge.s32.totalorder %s14, 4
      %s24 = sphi 0, %s26
      %s27 = sphi 0, %s24
      %s28 = sphi 0, %s27
      %s44 = sphi 0, %s28
      %s48 = sphi 0, %s48
      %s50 = sphi 0, %s48
      %s51 = sphi 0, %s50
      %s65 = sphi 0, %s51
      %s71 = sphi 0, %s73
      %s74 = sphi 0, %s71
      %s75 = sphi 0, %s74
      %s91 = sphi 0, %s75
    $region4: #{tpu_custom_call.1} parent=1 // loop_header_branch
      %17 = sbr.rel (%p15) target = $region8
    $region5: #{tpu_custom_call.1} parent=1 // loop_body
      %s19 = ssub.s32 %s14, 1
      %s20 = ssub.s32 %s14, 2
      %s21 = sadd.s32 %s14, 1
      %s22 = ssub.s32 %s14, %s21
      %p23 = scmp.eq.s32.totalorder %s22, 0
      %s25 = sadd.s32 %s24, 1
      %s26 = scalar_select %p23, %s24, %s25
      %p29 = pneg %p23
      %p30 = scmp.eq.s32.totalorder %s14, 1
      %p31 = por %p29, %p30
      %p32 = scmp.ne.s32.totalorder %s24, %s27
      %p33 = scmp.eq.s32.totalorder %s14, 0
      %p34 = por %p32, %p33
      %p35 = scmp.ne.s32.totalorder %s24, %s27
      %p36 = scmp.eq.s32.totalorder %s19, 1
      %p37 = por %p35, %p36
      %p38 = scmp.ne.s32.totalorder %s27, %s28
      %p39 = scmp.eq.s32.totalorder %s19, 0
      %p40 = por %p38, %p39
      %p41 = scmp.ne.s32.totalorder %s27, %s28
      %p42 = scmp.eq.s32.totalorder %s20, 1
      %p43 = por %p41, %p42
      %p45 = scmp.ne.s32.totalorder %s28, %s44
      %p46 = scmp.eq.s32.totalorder %s20, 0
      %p47 = por %p45, %p46
      %s49 = sadd.s32 %s48, 1
      %p52 = scmp.eq.s32.totalorder %s14, 1
      %p53 = scmp.ne.s32.totalorder %s48, %s50
      %p54 = scmp.eq.s32.totalorder %s14, 0
      %p55 = por %p53, %p54
      %p56 = scmp.ne.s32.totalorder %s48, %s50
      %p57 = scmp.eq.s32.totalorder %s19, 1
      %p58 = por %p56, %p57
      %p59 = scmp.ne.s32.totalorder %s50, %s51
      %p60 = scmp.eq.s32.totalorder %s19, 0
      %p61 = por %p59, %p60
      %p62 = scmp.ne.s32.totalorder %s50, %s51
      %p63 = scmp.eq.s32.totalorder %s20, 1
      %p64 = por %p62, %p63
      %p66 = scmp.ne.s32.totalorder %s51, %s65
      %p67 = scmp.eq.s32.totalorder %s20, 0
      %p68 = por %p66, %p67
      %s69 = ssub.s32 %s14, %s21
      %p70 = scmp.eq.s32.totalorder %s69, 0
      %s72 = sadd.s32 %s71, 1
      %s73 = scalar_select %p70, %s71, %s72
      %p76 = pneg %p70
      %p77 = scmp.eq.s32.totalorder %s14, 1
      %p78 = por %p76, %p77
      %p79 = scmp.ne.s32.totalorder %s71, %s74
      %p80 = scmp.eq.s32.totalorder %s14, 0
      %p81 = por %p79, %p80
      %p82 = scmp.ne.s32.totalorder %s71, %s74
      %p83 = scmp.eq.s32.totalorder %s19, 1
      %p84 = por %p82, %p83
      %p85 = scmp.ne.s32.totalorder %s74, %s75
      %p86 = scmp.eq.s32.totalorder %s19, 0
      %p87 = por %p85, %p86
      %p88 = scmp.ne.s32.totalorder %s74, %s75
      %p89 = scmp.eq.s32.totalorder %s20, 1
      %p90 = por %p88, %p89
      %p92 = scmp.ne.s32.totalorder %s75, %s91
      %p93 = scmp.eq.s32.totalorder %s20, 0
      %p94 = por %p92, %p93
      %p95 = scmp.le.s32.totalorder 1, %s14
      %p96 = scmp.lt.s32.totalorder %s14, 3
      %p97 = pnand %p95, %p96
      %p98 = pneg %p97
      // Predicated region
      $region9: #{tpu_custom_call.1} parent=5 // pred_check
        _
      $region10: #{tpu_custom_call.1} parent=5 // pred_check_branch
        %100 = sbr.rel (%p97) target = $region12
      $region11: #{tpu_custom_call.1} parent=5 // pred_region
        %s101 = ssub.s32 %s14, 1
        // Predicated region
        $region13: #{tpu_custom_call.1} parent=11 // pred_check
          %p102 = pneg %p61
        $region14: #{tpu_custom_call.1} parent=11 // pred_check_branch
          %104 = sbr.rel (%p102) target = $region16
        $region15: #{tpu_custom_call.1} parent=11 // pred_region
          _
        $region16: #{tpu_custom_call.1} parent=11 // pred_fallthru
          _
      $region12: #{tpu_custom_call.1} parent=5 // pred_fallthru
        _
      %p105 = scmp.lt.s32.totalorder %s14, 2
      // Predicated region
      $region17: #{tpu_custom_call.1} parent=5 // pred_check
        %p106 = pneg %p105
      $region18: #{tpu_custom_call.1} parent=5 // pred_check_branch
        %108 = sbr.rel (%p106) target = $region20
      $region19: #{tpu_custom_call.1} parent=5 // pred_region
        // Predicated region
        $region21: #{tpu_custom_call.1} parent=19 // pred_check
          %p109 = pneg %p34
        $region22: #{tpu_custom_call.1} parent=19 // pred_check_branch
          %111 = sbr.rel (%p109) target = $region24
        $region23: #{tpu_custom_call.1} parent=19 // pred_region
          %s112 = sand.u32 %s24, 1
          %s113 = scalar_lea.sflag [#allocation3], %s112
          %s114 = sand.u32 %s24, 1
          %s115 = smul.addr %s114, 8
          %s116 = scalar_lea.vmem [#allocation2], %s115
          %s118 = ssub.s32 128, 128
          %119 = vsyncadd %s113, %s118
          %s120 = smul.addr %s14, 128
          %s121 = scalar_lea.hbm %s0, %s120
          %s123 = sshll.u32 %s116, 4
          %s124 = int_to_ptr.vmem [resolvable:$true] %s123
          %126 = dma.hbm_to_vmem [thread:$0]  %s121, 128, %s124, %s113
        $region24: #{tpu_custom_call.1} parent=19 // pred_fallthru
          _
      $region20: #{tpu_custom_call.1} parent=5 // pred_fallthru
        _
      %p127 = scmp.le.s32.totalorder 1, %s14
      %p128 = scmp.lt.s32.totalorder %s14, 3
      %p129 = pnand %p127, %p128
      %p130 = pneg %p129
      // Predicated region
      $region25: #{tpu_custom_call.1} parent=5 // pred_check
        _
      $region26: #{tpu_custom_call.1} parent=5 // pred_check_branch
        %132 = sbr.rel (%p129) target = $region28
      $region27: #{tpu_custom_call.1} parent=5 // pred_region
        %s133 = ssub.s32 %s14, 1
        %s134 = sand.u32 %s27, 1
        %s135 = scalar_lea.sflag [#allocation3], %s134
        %s136 = sand.u32 %s27, 1
        %s137 = smul.addr %s136, 8
        %s138 = scalar_lea.vmem [#allocation2], %s137
        // Predicated region
        $region29: #{tpu_custom_call.1} parent=27 // pred_check
          %p139 = pneg %p40
        $region30: #{tpu_custom_call.1} parent=27 // pred_check_branch
          %141 = sbr.rel (%p139) target = $region32
        $region31: #{tpu_custom_call.1} parent=27 // pred_region
          %142 = dma.done %s135, 128
        $region32: #{tpu_custom_call.1} parent=27 // pred_fallthru
          _
        %s143 = sand.u32 %s27, 1
        %s144 = scalar_lea.sflag [#allocation3], %s143
        %s145 = sand.u32 %s27, 1
        %s146 = smul.addr %s145, 8
        %s147 = scalar_lea.vmem [#allocation2], %s146
        %p148 = pneg %p40
        %p149 = pneg %p37
        %p150 = pneg %p61
        %p151 = pneg %p58
        %p152 = pneg %p87
        %p153 = pneg %p84
        %s154 = sand.u32 %s74, 1
        %s155 = scalar_lea.sflag [#allocation4], %s154
        %s156 = sand.u32 %s74, 1
        %s157 = smul.addr %s156, 8
        %s158 = scalar_lea.vmem [#allocation5], %s157
        %v159 = vld [vmem:[%s138] sm:$0xff]
        %v160 = vld [vmem:[%s1] sm:$0x3]
        %161 = vadd.xlane.f32.xlu0 %v159
        %v162 = vpop.xlane.xlu0 %161
        %v163 = vmul.f32 %v162, 0.0078125
        %v164 = vsub.f32 %v159, %v163
        %v165 = vmul.f32 %v164, %v164
        %166 = vadd.xlane.f32.xlu0 %v165
        %v167 = vpop.xlane.xlu0 %166
        %v168 = vmul.f32 %v167, 0.007874016
        %v169 = vrsqrt.pop %v168
        %v170 = vmul.f32 %v168, %v169
        %vm171 = vcmp.eq.f32.partialorder %v168, inf
        %v172 = vsel %vm171, %v168, %v170
        %vm173 = vcmp.eq.f32.partialorder %v168, 0.0
        %v174 = vand.u32 %v168, 2147483648
        %v175 = vsel %vm173, %v174, %v172
        %v176 = vadd.f32 %v175, 1e-06
        %v177 = vrcp.pop %v176
        %v178 = vmul.f32 %v164, %v177
        %v179 = vlaneseq
        %v180 = vshrl.u32 %v179, 7
        %v181 = vsub.s32 0, %v180
        %v182 = vrot.slane %v160, %v181
        %v183 = vmul.f32 %v178, %v182
        %v184 = vlaneseq
        %v185 = vshrl.u32 %v184, 7
        %v186 = vsub.s32 1, %v185
        %v187 = vrot.slane %v160, %v186
        %v188 = vadd.f32 %v183, %v187
        %189 = vst [vmem:[%s158] sm:$0xff] %v188
        %s190 = sand.u32 %s74, 1
        %s191 = scalar_lea.sflag [#allocation4], %s190
        %s192 = sand.u32 %s74, 1
        %s193 = smul.addr %s192, 8
        %s194 = scalar_lea.vmem [#allocation5], %s193
        // Predicated region
        $region33: #{tpu_custom_call.1} parent=27 // pred_check
          %p195 = pneg %p84
        $region34: #{tpu_custom_call.1} parent=27 // pred_check_branch
          %197 = sbr.rel (%p195) target = $region36
        $region35: #{tpu_custom_call.1} parent=27 // pred_region
          %s199 = ssub.s32 128, 128
          %200 = vsyncadd %s191, %s199
          %s201 = smul.addr %s19, 128
          %s202 = scalar_lea.hbm %s2, %s201
          %s204 = sshll.u32 %s194, 4
          %s205 = int_to_ptr.vmem [resolvable:$true] %s204
          %207 = dma.vmem_to_hbm [thread:$0]  %s205, 128, %s202, %s191
        $region36: #{tpu_custom_call.1} parent=27 // pred_fallthru
          _
      $region28: #{tpu_custom_call.1} parent=5 // pred_fallthru
        _
      %p208 = scmp.le.s32.totalorder 2, %s14
      // Predicated region
      $region37: #{tpu_custom_call.1} parent=5 // pred_check
        %p209 = pneg %p208
      $region38: #{tpu_custom_call.1} parent=5 // pred_check_branch
        %211 = sbr.rel (%p209) target = $region40
      $region39: #{tpu_custom_call.1} parent=5 // pred_region
        %s212 = ssub.s32 %s14, 2
        // Predicated region
        $region41: #{tpu_custom_call.1} parent=39 // pred_check
          %p213 = pneg %p90
        $region42: #{tpu_custom_call.1} parent=39 // pred_check_branch
          %215 = sbr.rel (%p213) target = $region44
        $region43: #{tpu_custom_call.1} parent=39 // pred_region
          %s216 = sand.u32 %s75, 1
          %s217 = scalar_lea.sflag [#allocation4], %s216
          %s218 = sand.u32 %s75, 1
          %s219 = smul.addr %s218, 8
          %s220 = scalar_lea.vmem [#allocation5], %s219
          %221 = dma.done %s217, 128
        $region44: #{tpu_custom_call.1} parent=39 // pred_fallthru
          _
      $region40: #{tpu_custom_call.1} parent=5 // pred_fallthru
        _
    $region6: #{tpu_custom_call.1} parent=1 // loop_footer
      %s18 = sadd.s32 1, %s14
    $region7: #{tpu_custom_call.1} parent=1 // loop_footer_branch
      %13 = sbr.rel target = $region3
    $region8: #{tpu_custom_call.1} parent=1 // loop_exit
      _
    %222 = vsyncpa [#allocation3], 1
    %s223 = scalar_lea.sflag [#allocation3], 1
    %224 = vsyncpa %s223, 1
    %225 = vsyncpa [#allocation4], 1
    %s226 = scalar_lea.sflag [#allocation4], 1
    %227 = vsyncpa %s226, 1

</llo_original>
